<compile_context>
chip_gen: v7x
topology: tpu7x:2x2x1
jax: 0.10.0
libtpu: 0.0.40
codegen_flags: <defaults>
</compile_context>

<pallas_src>
import math

import jax
import jax.numpy as jnp
from jax import lax
from jax.experimental import pallas as pl
from jax.experimental.pallas import tpu as pltpu

LANES = 128
MAX_TILE_ROWS = 1024   # 1024 x 128 x f32 = 512 KiB per operand block
CHUNK_ROWS = 128       # inner-loop chunk: 16 vregs / operand / iteration


def _make_kernel(tile_rows, chunk_rows, n_chunks, rows_valid, bpc, needs_mask, unroll):
    """Build the reduction kernel with all tiling parameters closed over (static)."""

    def kernel(pred_ref, tgt_ref, out_ref, abs_acc, sqd_acc, sqt_acc):
        c = pl.program_id(0)   # core-split axis ("parallel")
        i = pl.program_id(1)   # reduction axis ("arbitrary")

        @pl.when(i == 0)
        def _init():
            abs_acc[...] = jnp.zeros_like(abs_acc)
            sqd_acc[...] = jnp.zeros_like(sqd_acc)
            sqt_acc[...] = jnp.zeros_like(sqt_acc)

        blk = c * bpc + i      # logical (unclamped) block index

        def accumulate(p, t):
            d = p - t
            # Fold the chunk into vreg-shaped (8, 128) accumulators: pure VPU adds,
            # no cross-lane (XLU) work per step.
            abs_acc[...] += jnp.sum(jnp.abs(d).reshape(-1, 8, LANES), axis=0)
            sqd_acc[...] += jnp.sum((d * d).reshape(-1, 8, LANES), axis=0)
            sqt_acc[...] += jnp.sum((t * t).reshape(-1, 8, LANES), axis=0)

        def fast_chunk(j, carry):
            r0 = pl.multiple_of(j * chunk_rows, chunk_rows)
            p = pred_ref[pl.ds(r0, chunk_rows), :].astype(jnp.float32)
            t = tgt_ref[pl.ds(r0, chunk_rows), :].astype(jnp.float32)
            accumulate(p, t)
            return carry

        def masked_chunk(j, carry):
            r0 = pl.multiple_of(j * chunk_rows, chunk_rows)
            p = pred_ref[pl.ds(r0, chunk_rows), :].astype(jnp.float32)
            t = tgt_ref[pl.ds(r0, chunk_rows), :].astype(jnp.float32)
            g = (blk * tile_rows + r0
                 + lax.broadcasted_iota(jnp.int32, (chunk_rows, LANES), 0))
            valid = g < rows_valid
            accumulate(jnp.where(valid, p, 0.0), jnp.where(valid, t, 0.0))
            return carry

        if needs_mask:
            is_full = (blk + 1) * tile_rows <= rows_valid

            @pl.when(is_full)
            def _full():
                lax.fori_loop(0, n_chunks, fast_chunk, 0, unroll=unroll)

            @pl.when(jnp.logical_not(is_full))
            def _partial():
                lax.fori_loop(0, n_chunks, masked_chunk, 0, unroll=unroll)
        else:
            lax.fori_loop(0, n_chunks, fast_chunk, 0, unroll=unroll)

        @pl.when(i == pl.num_programs(1) - 1)
        def _finalize():
            out_ref[0, 0, :, :] = abs_acc[...]
            out_ref[0, 1, :, :] = sqd_acc[...]
            out_ref[0, 2, :, :] = sqt_acc[...]

    return kernel


def mel_spectrogram_loss(pred, target, eps=1e-10):
    """Pallas implementation of MelSpectrogramLoss.forward (L1 + spectral convergence)."""
    assert pred.shape == target.shape, (pred.shape, target.shape)
    n_elems = pred.size

    # Keep native dtype: flatten is a free bitcast; cast to f32 happens in-kernel.
    pred_f = pred.reshape(-1)
    tgt_f = target.reshape(-1)

    # Sublane granularity depends on dtype packing (f32: 8, bf16: 16, int8/fp8: 32).
    itemsize = jnp.dtype(pred_f.dtype).itemsize
    sublane = {4: 8, 2: 16, 1: 32}.get(itemsize, 8)
    align = sublane * LANES

    padded = pl.cdiv(n_elems, align) * align
    if padded != n_elems:
        # Only materializes a copy when the input is not already tile-aligned.
        # Zero padding contributes 0 to every partial sum -> exact result.
        pred_f = jnp.pad(pred_f, (0, padded - n_elems))
        tgt_f = jnp.pad(tgt_f, (0, padded - n_elems))

    rows = padded // LANES
    pred2 = pred_f.reshape(rows, LANES)   # free (row-major) reshape
    tgt2 = tgt_f.reshape(rows, LANES)

    tile_rows = min(MAX_TILE_ROWS, rows)
    total_blocks = pl.cdiv(rows, tile_rows)
    needs_mask = (total_blocks * tile_rows != rows)   # partial last block

    # Split the stream across the 2 TensorCores on v7x; harmless elsewhere.
    ncores = 2 if total_blocks >= 2 else 1
    bpc = pl.cdiv(total_blocks, ncores)               # blocks per core
    needs_clamp = (ncores * bpc != total_blocks)      # odd block count -> duplicate
    needs_mask = needs_mask or needs_clamp
    last_block = total_blocks - 1

    if tile_rows % CHUNK_ROWS == 0:
        chunk_rows = CHUNK_ROWS
    else:
        chunk_rows = math.gcd(tile_rows, CHUNK_ROWS)  # still a multiple of 8
    n_chunks = tile_rows // chunk_rows
    unroll = n_chunks <= 16

    def in_index_map(c, i):
        blk = c * bpc + i
        if needs_clamp:
            # Duplicate block is fully masked in-kernel, so clamping is safe.
            blk = jnp.minimum(blk, last_block)
        return (blk, 0)

    kernel = _make_kernel(tile_rows, chunk_rows, n_chunks, rows, bpc,
                          needs_mask, unroll)

    partials = pl.pallas_call(
        kernel,
        out_shape=jax.ShapeDtypeStruct((ncores, 3, 8, LANES), jnp.float32),
        grid_spec=pltpu.PrefetchScalarGridSpec(
            num_scalar_prefetch=0,
            grid=(ncores, bpc),
            in_specs=[
                pl.BlockSpec((tile_rows, LANES), in_index_map),
                pl.BlockSpec((tile_rows, LANES), in_index_map),
            ],
            out_specs=pl.BlockSpec((1, 3, 8, LANES), lambda c, i: (c, 0, 0, 0)),
            scratch_shapes=[
                pltpu.VMEM((8, LANES), jnp.float32),
                pltpu.VMEM((8, LANES), jnp.float32),
                pltpu.VMEM((8, LANES), jnp.float32),
            ],
        ),
        compiler_params=pltpu.CompilerParams(
            dimension_semantics=("parallel", "arbitrary")),
    )(pred2, tgt2)

    # Cheap scalar epilogue in JAX: reduce the (ncores, 3, 8, 128) partial sums.
    sums = jnp.sum(partials, axis=(0, 2, 3))
    sum_abs, sum_sq_diff, sum_sq_tgt = sums[0], sums[1], sums[2]

    l1 = sum_abs / n_elems                                      # F.l1_loss (mean)
    sc = jnp.sqrt(sum_sq_diff) / (jnp.sqrt(sum_sq_tgt) + eps)   # fro-norm ratio
    return l1 + sc


if __name__ == "__main__":
    key = jax.random.PRNGKey(0)
    k1, k2 = jax.random.split(key)
    # Small mel-spectrogram-like batch: (batch=2, channels=4, n_mels=16, frames=16)
    pred = jax.random.normal(k1, (2, 4, 16, 16), dtype=jnp.float32)
    target = jax.random.normal(k2, (2, 4, 16, 16), dtype=jnp.float32)

    loss = jax.block_until_ready(mel_spectrogram_loss(pred, target))

    # Pure-JAX reference check (same semantics as the PyTorch module).
    eps = 1e-10
    l1_ref = jnp.mean(jnp.abs(pred - target))
    sc_ref = (jnp.linalg.norm((target - pred).reshape(-1))
              / (jnp.linalg.norm(target.reshape(-1)) + eps))
    ref = l1_ref + sc_ref
    assert jnp.allclose(loss, ref, rtol=1e-5, atol=1e-5), (loss, ref)

    print("KERNEL_OK")
</pallas_src>

<mosaic_0001>
module attributes {stable_mosaic.version = 11 : i64} {
  func.func @kernel(%arg0: i32, %arg1: i32, %arg2: memref<16x128xf32, #tpu.memory_space<vmem>>, %arg3: memref<16x128xf32, #tpu.memory_space<vmem>>, %arg4: memref<1x3x8x128xf32, #tpu.memory_space<vmem>>, %arg5: memref<8x128xf32, #tpu.memory_space<vmem>>, %arg6: memref<8x128xf32, #tpu.memory_space<vmem>>, %arg7: memref<8x128xf32, #tpu.memory_space<vmem>>) attributes {dimension_semantics = [#tpu.dimension_semantics<parallel>, #tpu.dimension_semantics<arbitrary>], iteration_bounds = array<i64: 1, 1>, scalar_prefetch = 0 : i64, scratch_operands = 3 : i64, tpu.core_type = #tpu.core_type<tc>, window_params = [{transform_indices = @transform_0, window_bounds = array<i64: 16, 128>}, {transform_indices = @transform_1, window_bounds = array<i64: 16, 128>}, {transform_indices = @transform_2, window_bounds = array<i64: 1, 3, 8, 128>}]} {
    %c0_i32 = arith.constant 0 : i32
    %0 = arith.cmpi eq, %arg1, %c0_i32 : i32
    %1 = arith.extui %0 : i1 to i32
    %c0_i32_0 = arith.constant 0 : i32
    %2 = arith.cmpi ne, %1, %c0_i32_0 : i32
    scf.if %2 {
      %cst_19 = arith.constant 0.000000e+00 : f32
      %31 = vector.broadcast %cst_19 : f32 to vector<8x128xf32>
      %c0_20 = arith.constant 0 : index
      %c0_21 = arith.constant 0 : index
      %32 = vector.load %arg5[%c0_20, %c0_21] : memref<8x128xf32, #tpu.memory_space<vmem>>, vector<8x128xf32>
      tpu.vector_store %arg5[%c0_20, %c0_21], %31 {strides = array<i32>} : memref<8x128xf32, #tpu.memory_space<vmem>>, vector<8x128xf32>,
      %cst_22 = arith.constant 0.000000e+00 : f32
      %33 = vector.broadcast %cst_22 : f32 to vector<8x128xf32>
      %c0_23 = arith.constant 0 : index
      %c0_24 = arith.constant 0 : index
      %34 = vector.load %arg6[%c0_23, %c0_24] : memref<8x128xf32, #tpu.memory_space<vmem>>, vector<8x128xf32>
      tpu.vector_store %arg6[%c0_23, %c0_24], %33 {strides = array<i32>} : memref<8x128xf32, #tpu.memory_space<vmem>>, vector<8x128xf32>,
      %cst_25 = arith.constant 0.000000e+00 : f32
      %35 = vector.broadcast %cst_25 : f32 to vector<8x128xf32>
      %c0_26 = arith.constant 0 : index
      %c0_27 = arith.constant 0 : index
      %36 = vector.load %arg7[%c0_26, %c0_27] : memref<8x128xf32, #tpu.memory_space<vmem>>, vector<8x128xf32>
      tpu.vector_store %arg7[%c0_26, %c0_27], %35 {strides = array<i32>} : memref<8x128xf32, #tpu.memory_space<vmem>>, vector<8x128xf32>,
    } else {
    }
    %c0_i32_1 = arith.constant 0 : i32
    %c16_i32 = arith.constant 16 : i32
    %3 = arith.muli %c0_i32_1, %c16_i32 : i32
    %4 = tpu.assume_multiple %3, 16 : i32
    %5 = arith.index_cast %4 : i32 to index
    %c0 = arith.constant 0 : index
    %6 = vector.load %arg2[%5, %c0] : memref<16x128xf32, #tpu.memory_space<vmem>>, vector<16x128xf32>
    %7 = arith.index_cast %4 : i32 to index
    %c0_2 = arith.constant 0 : index
    %8 = vector.load %arg3[%7, %c0_2] : memref<16x128xf32, #tpu.memory_space<vmem>>, vector<16x128xf32>
    %9 = arith.subf %6, %8 : vector<16x128xf32>
    %c0_3 = arith.constant 0 : index
    %c0_4 = arith.constant 0 : index
    %10 = vector.load %arg5[%c0_3, %c0_4] : memref<8x128xf32, #tpu.memory_space<vmem>>, vector<8x128xf32>
    %11 = math.absf %9 : vector<16x128xf32>
    %12 = vector.shape_cast %11 : vector<16x128xf32> to vector<2x8x128xf32>
    %cst = arith.constant dense<0.000000e+00> : vector<8x128xf32>
    %13 = vector.multi_reduction <add>, %12, %cst [0] : vector<2x8x128xf32> to vector<8x128xf32>
    %14 = arith.addf %10, %13 : vector<8x128xf32>
    %c0_5 = arith.constant 0 : index
    %c0_6 = arith.constant 0 : index
    %15 = vector.load %arg5[%c0_5, %c0_6] : memref<8x128xf32, #tpu.memory_space<vmem>>, vector<8x128xf32>
    tpu.vector_store %arg5[%c0_5, %c0_6], %14 {strides = array<i32>} : memref<8x128xf32, #tpu.memory_space<vmem>>, vector<8x128xf32>,
    %c0_7 = arith.constant 0 : index
    %c0_8 = arith.constant 0 : index
    %16 = vector.load %arg6[%c0_7, %c0_8] : memref<8x128xf32, #tpu.memory_space<vmem>>, vector<8x128xf32>
    %17 = arith.mulf %9, %9 : vector<16x128xf32>
    %18 = vector.shape_cast %17 : vector<16x128xf32> to vector<2x8x128xf32>
    %cst_9 = arith.constant dense<0.000000e+00> : vector<8x128xf32>
    %19 = vector.multi_reduction <add>, %18, %cst_9 [0] : vector<2x8x128xf32> to vector<8x128xf32>
    %20 = arith.addf %16, %19 : vector<8x128xf32>
    %c0_10 = arith.constant 0 : index
    %c0_11 = arith.constant 0 : index
    %21 = vector.load %arg6[%c0_10, %c0_11] : memref<8x128xf32, #tpu.memory_space<vmem>>, vector<8x128xf32>
    tpu.vector_store %arg6[%c0_10, %c0_11], %20 {strides = array<i32>} : memref<8x128xf32, #tpu.memory_space<vmem>>, vector<8x128xf32>,
    %c0_12 = arith.constant 0 : index
    %c0_13 = arith.constant 0 : index
    %22 = vector.load %arg7[%c0_12, %c0_13] : memref<8x128xf32, #tpu.memory_space<vmem>>, vector<8x128xf32>
    %23 = arith.mulf %8, %8 : vector<16x128xf32>
    %24 = vector.shape_cast %23 : vector<16x128xf32> to vector<2x8x128xf32>
    %cst_14 = arith.constant dense<0.000000e+00> : vector<8x128xf32>
    %25 = vector.multi_reduction <add>, %24, %cst_14 [0] : vector<2x8x128xf32> to vector<8x128xf32>
    %26 = arith.addf %22, %25 : vector<8x128xf32>
    %c0_15 = arith.constant 0 : index
    %c0_16 = arith.constant 0 : index
    %27 = vector.load %arg7[%c0_15, %c0_16] : memref<8x128xf32, #tpu.memory_space<vmem>>, vector<8x128xf32>
    tpu.vector_store %arg7[%c0_15, %c0_16], %26 {strides = array<i32>} : memref<8x128xf32, #tpu.memory_space<vmem>>, vector<8x128xf32>,
    %c1_i32 = arith.constant 1 : i32
    %c0_i32_17 = arith.constant 0 : i32
    %28 = arith.cmpi eq, %arg1, %c0_i32_17 : i32
    %29 = arith.extui %28 : i1 to i32
    %c0_i32_18 = arith.constant 0 : i32
    %30 = arith.cmpi ne, %29, %c0_i32_18 : i32
    scf.if %30 {
      %c0_19 = arith.constant 0 : index
      %c0_20 = arith.constant 0 : index
      %31 = vector.load %arg5[%c0_19, %c0_20] : memref<8x128xf32, #tpu.memory_space<vmem>>, vector<8x128xf32>
      %c0_21 = arith.constant 0 : index
      %c0_22 = arith.constant 0 : index
      %c0_23 = arith.constant 0 : index
      %c0_24 = arith.constant 0 : index
      %32 = vector.load %arg4[%c0_21, %c0_22, %c0_23, %c0_24] : memref<1x3x8x128xf32, #tpu.memory_space<vmem>>, vector<1x1x8x128xf32>
      %33 = vector.shape_cast %32 : vector<1x1x8x128xf32> to vector<8x128xf32>
      %34 = vector.shape_cast %31 : vector<8x128xf32> to vector<1x1x8x128xf32>
      tpu.vector_store %arg4[%c0_21, %c0_22, %c0_23, %c0_24], %34 {strides = array<i32>} : memref<1x3x8x128xf32, #tpu.memory_space<vmem>>, vector<1x1x8x128xf32>,
      %c0_25 = arith.constant 0 : index
      %c0_26 = arith.constant 0 : index
      %35 = vector.load %arg6[%c0_25, %c0_26] : memref<8x128xf32, #tpu.memory_space<vmem>>, vector<8x128xf32>
      %c0_27 = arith.constant 0 : index
      %c1 = arith.constant 1 : index
      %c0_28 = arith.constant 0 : index
      %c0_29 = arith.constant 0 : index
      %36 = vector.load %arg4[%c0_27, %c1, %c0_28, %c0_29] : memref<1x3x8x128xf32, #tpu.memory_space<vmem>>, vector<1x1x8x128xf32>
      %37 = vector.shape_cast %36 : vector<1x1x8x128xf32> to vector<8x128xf32>
      %38 = vector.shape_cast %35 : vector<8x128xf32> to vector<1x1x8x128xf32>
      tpu.vector_store %arg4[%c0_27, %c1, %c0_28, %c0_29], %38 {strides = array<i32>} : memref<1x3x8x128xf32, #tpu.memory_space<vmem>>, vector<1x1x8x128xf32>,
      %c0_30 = arith.constant 0 : index
      %c0_31 = arith.constant 0 : index
      %39 = vector.load %arg7[%c0_30, %c0_31] : memref<8x128xf32, #tpu.memory_space<vmem>>, vector<8x128xf32>
      %c0_32 = arith.constant 0 : index
      %c2 = arith.constant 2 : index
      %c0_33 = arith.constant 0 : index
      %c0_34 = arith.constant 0 : index
      %40 = vector.load %arg4[%c0_32, %c2, %c0_33, %c0_34] : memref<1x3x8x128xf32, #tpu.memory_space<vmem>>, vector<1x1x8x128xf32>
      %41 = vector.shape_cast %40 : vector<1x1x8x128xf32> to vector<8x128xf32>
      %42 = vector.shape_cast %39 : vector<8x128xf32> to vector<1x1x8x128xf32>
      tpu.vector_store %arg4[%c0_32, %c2, %c0_33, %c0_34], %42 {strides = array<i32>} : memref<1x3x8x128xf32, #tpu.memory_space<vmem>>, vector<1x1x8x128xf32>,
    } else {
    }
    return
  }
  func.func @transform_0(%arg0: i32, %arg1: i32) -> (i32, i32) {
    %c1_i32 = arith.constant 1 : i32
    %0 = arith.muli %arg0, %c1_i32 : i32
    %1 = arith.addi %0, %arg1 : i32
    %c0_i32 = arith.constant 0 : i32
    %c0_i32_0 = arith.constant 0 : i32
    return %1, %c0_i32 : i32, i32
  }
  func.func @transform_1(%arg0: i32, %arg1: i32) -> (i32, i32) {
    %c1_i32 = arith.constant 1 : i32
    %0 = arith.muli %arg0, %c1_i32 : i32
    %1 = arith.addi %0, %arg1 : i32
    %c0_i32 = arith.constant 0 : i32
    %c0_i32_0 = arith.constant 0 : i32
    return %1, %c0_i32 : i32, i32
  }
  func.func @transform_2(%arg0: i32, %arg1: i32) -> (i32, i32, i32, i32) {
    %c0_i32 = arith.constant 0 : i32
    %c0_i32_0 = arith.constant 0 : i32
    %c0_i32_1 = arith.constant 0 : i32
    %c0_i32_2 = arith.constant 0 : i32
    return %arg0, %c0_i32, %c0_i32_0, %c0_i32_1 : i32, i32, i32, i32
  }
}

</mosaic_0001>

<llo_original>
// kernel: tpu_custom_call.1
$region0: #{tpu_custom_call.1}
  #allocation0 [shape = 'u32[]', space=smem, size = 0x4, offset = 0x4, fixed_abs, tag = 'smem constant byte address 0x4 - core index']
  #allocation1 [shape = 'u32[144,128]{1,0:T(1,128)}', space=vmem, size = 0x12000, scoped, tag = 'internal scratch']
  #allocation2 [shape = 'f32[8,128]{1,0:T(8,128)}', space=vmem, size = 0x1000, scoped, tag = 'scratch operand']
  #allocation3 [shape = 'f32[8,128]{1,0:T(8,128)}', space=vmem, size = 0x1000, scoped, tag = 'scratch operand']
  #allocation4 [shape = 'f32[8,128]{1,0:T(8,128)}', space=vmem, size = 0x1000, scoped, tag = 'scratch operand']
  %s0 = inlined_call_operand.hbm [shape: f32[16,128], index: 0, kind: input, shape index: {}]
  %s1 = inlined_call_operand.hbm [shape: f32[16,128], index: 1, kind: input, shape index: {}]
  %s2 = inlined_call_operand.hbm [shape: f32[1,3,8,128], index: 2, kind: output, shape index: {}]
  %s3 = sld [smem:[#allocation0]]
  $region34: #{tpu_custom_call.1} parent=0
    _
  %s5 = ssub.s32 1, %s3
  %s6 = scalar_select 0, %s5, %s3
  $region1: #{tpu_custom_call.1} parent=0
    #allocation5 [shape = 'u8[8192]{0}', space=vmem, size = 0x2000, scoped, tag = 'input window, operand 0, single buffered']
    #allocation6 [shape = 's32[1]{0}', space=sflag, size = 0x4, scoped, tag = 'scoped memory for tpu_custom_call.1']
    #allocation7 [shape = 's32[1]{0}', space=sflag, size = 0x4, scoped, tag = 'scoped memory for tpu_custom_call.1']
    #allocation8 [shape = 'u8[8192]{0}', space=vmem, size = 0x2000, scoped, tag = 'input window, operand 1, single buffered']
    #allocation9 [shape = 's32[1]{0}', space=sflag, size = 0x4, scoped, tag = 'scoped memory for tpu_custom_call.1']
    #allocation10 [shape = 'u8[12288]{0}', space=vmem, size = 0x3000, scoped, tag = 'output window, operand 0, single buffered']
    %7 = vsyncpa [#allocation6], 0
    %8 = vsyncpa [#allocation9], 0
    %9 = vsyncpa [#allocation7], 0
    // Predicated region
    $region2: #{tpu_custom_call.1} parent=1 // pred_check
      _
    $region3: #{tpu_custom_call.1} parent=1 // pred_check_branch
      %11 = sbr.rel (0) target = $region5
    $region4: #{tpu_custom_call.1} parent=1 // pred_region
      %s12 = sadd.s32 0, 0
      %s13 = smul.u32 2, %s12
      %s15 = ssub.s32 256, 256
      %16 = vsyncadd [#allocation6], %s15
      %s17 = smul.addr %s13, 128
      %s18 = scalar_lea.hbm %s0, %s17
      %s19 = sshll.u32 [#allocation5], 4
      %s20 = int_to_ptr.vmem [resolvable:$true] %s19
      %25 = dma.hbm_to_vmem [thread:$0]  %s18, 256, %s20, [#allocation6], 128, 128, 8
    $region5: #{tpu_custom_call.1} parent=1 // pred_fallthru
      _
    // Predicated region
    $region6: #{tpu_custom_call.1} parent=1 // pred_check
      _
    $region7: #{tpu_custom_call.1} parent=1 // pred_check_branch
      %27 = sbr.rel (0) target = $region9
    $region8: #{tpu_custom_call.1} parent=1 // pred_region
      %s28 = sadd.s32 0, 0
      %s29 = smul.u32 2, %s28
      %s31 = ssub.s32 256, 256
      %32 = vsyncadd [#allocation9], %s31
      %s33 = smul.addr %s29, 128
      %s34 = scalar_lea.hbm %s1, %s33
      %s35 = sshll.u32 [#allocation8], 4
      %s36 = int_to_ptr.vmem [resolvable:$true] %s35
      %41 = dma.hbm_to_vmem [thread:$0]  %s34, 256, %s36, [#allocation9], 128, 128, 8
    $region9: #{tpu_custom_call.1} parent=1 // pred_fallthru
      _
    // Predicated region
    $region10: #{tpu_custom_call.1} parent=1 // pred_check
      _
    $region11: #{tpu_custom_call.1} parent=1 // pred_check_branch
      %43 = sbr.rel (0) target = $region13
    $region12: #{tpu_custom_call.1} parent=1 // pred_region
      %44 = dma.done [#allocation6], 256
    $region13: #{tpu_custom_call.1} parent=1 // pred_fallthru
      _
    // Predicated region
    $region14: #{tpu_custom_call.1} parent=1 // pred_check
      _
    $region15: #{tpu_custom_call.1} parent=1 // pred_check_branch
      %46 = sbr.rel (0) target = $region17
    $region16: #{tpu_custom_call.1} parent=1 // pred_region
      %47 = dma.done [#allocation9], 256
    $region17: #{tpu_custom_call.1} parent=1 // pred_fallthru
      _
    %s48 = sadd.s32 0, 0
    %s49 = smul.u32 2, %s48
    %s50 = sadd.s32 0, 0
    %s51 = smul.u32 2, %s50
    %p52 = scmp.eq.s32.totalorder 0, 0
    // Predicated region
    $region18: #{tpu_custom_call.1} parent=1 // pred_check
      %p53 = pneg %p52
    $region19: #{tpu_custom_call.1} parent=1 // pred_check_branch
      %55 = sbr.rel (%p53) target = $region21
    $region20: #{tpu_custom_call.1} parent=1 // pred_region
      %56 = vst [vmem:[#allocation2] sm:$0xff] 0.0
      %57 = vst [vmem:[#allocation3] sm:$0xff] 0.0
      %58 = vst [vmem:[#allocation4] sm:$0xff] 0.0
    $region21: #{tpu_custom_call.1} parent=1 // pred_fallthru
      _
    %v59 = vld [vmem:[#allocation5] sm:$0xff]
    %v60 = vld [vmem:[#allocation5 + $0x8] sm:$0xff]
    %v61 = vld [vmem:[#allocation8] sm:$0xff]
    %v62 = vld [vmem:[#allocation8 + $0x8] sm:$0xff]
    %v63 = vsub.f32 %v59, %v61
    %v64 = vsub.f32 %v60, %v62
    %v65 = vld [vmem:[#allocation2] sm:$0xff]
    %v66 = vand.u32 2147483647, %v63
    %v67 = vand.u32 2147483647, %v64
    %v68 = vadd.f32 %v66, %v67
    %v69 = vadd.f32 %v65, %v68
    %70 = vst [vmem:[#allocation2] sm:$0xff] %v69
    %v71 = vld [vmem:[#allocation3] sm:$0xff]
    %v72 = vmul.f32 %v63, %v63
    %v73 = vmul.f32 %v64, %v64
    %v74 = vadd.f32 %v72, %v73
    %v75 = vadd.f32 %v71, %v74
    %76 = vst [vmem:[#allocation3] sm:$0xff] %v75
    %v77 = vld [vmem:[#allocation4] sm:$0xff]
    %v78 = vmul.f32 %v61, %v61
    %v79 = vmul.f32 %v62, %v62
    %v80 = vadd.f32 %v78, %v79
    %v81 = vadd.f32 %v77, %v80
    %82 = vst [vmem:[#allocation4] sm:$0xff] %v81
    // Predicated region
    $region22: #{tpu_custom_call.1} parent=1 // pred_check
      %p83 = pneg %p52
    $region23: #{tpu_custom_call.1} parent=1 // pred_check_branch
      %85 = sbr.rel (%p83) target = $region25
    $region24: #{tpu_custom_call.1} parent=1 // pred_region
      %v86 = vld [vmem:[#allocation2] sm:$0xff]
      %87 = vst [vmem:[#allocation10] sm:$0xff] %v86
      %v88 = vld [vmem:[#allocation3] sm:$0xff]
      %s89 = scalar_lea.vmem [#allocation10], 8
      %90 = vst [vmem:[%s89] sm:$0xff] %v88
      %v91 = vld [vmem:[#allocation4] sm:$0xff]
      %s92 = scalar_lea.vmem [#allocation10], 16
      %93 = vst [vmem:[%s92] sm:$0xff] %v91
    $region25: #{tpu_custom_call.1} parent=1 // pred_fallthru
      _
    // Predicated region
    $region26: #{tpu_custom_call.1} parent=1 // pred_check
      _
    $region27: #{tpu_custom_call.1} parent=1 // pred_check_branch
      %95 = sbr.rel (0) target = $region29
    $region28: #{tpu_custom_call.1} parent=1 // pred_region
      %s97 = ssub.s32 384, 384
      %98 = vsyncadd [#allocation7], %s97
      %s99 = sshll.u32 [#allocation10], 4
      %s100 = int_to_ptr.vmem [resolvable:$true] %s99
      %105 = dma.vmem_to_hbm [thread:$0]  %s100, 384, %s2, [#allocation7], 128, 128, 8
    $region29: #{tpu_custom_call.1} parent=1 // pred_fallthru
      _
    // Predicated region
    $region30: #{tpu_custom_call.1} parent=1 // pred_check
      _
    $region31: #{tpu_custom_call.1} parent=1 // pred_check_branch
      %107 = sbr.rel (0) target = $region33
    $region32: #{tpu_custom_call.1} parent=1 // pred_region
      %108 = dma.done [#allocation7], 384
    $region33: #{tpu_custom_call.1} parent=1 // pred_fallthru
      _
    %109 = vsyncpa [#allocation6], 1
    %110 = vsyncpa [#allocation9], 1
    %111 = vsyncpa [#allocation7], 1

</llo_original>
